<compile_context>
chip_gen: v7x
topology: tpu7x:2x2x1
jax: 0.10.0
libtpu: 0.0.40
codegen_flags: <defaults>
</compile_context>

<pallas_src>
import functools

import jax
import jax.numpy as jnp
from jax.experimental import pallas as pl
from jax.experimental.pallas import tpu as pltpu


def _round_up(v, m):
    return (v + m - 1) // m * m


def _fused_graphsage_kernel(
    a_ref,      # [TM, N_pad]    bf16  adjacency row tile (edge counts), streamed
    x_ref,      # [N_pad, Fin]   f32   node features (resident)
    dinv_ref,   # [N_pad, 1]     f32   1 / in-degree (resident)
    wl1_ref,    # [Fin, HID]     f32
    wr1_ref,    # [Fin, HID]     f32
    b1_ref,     # [1, HID]       f32
    wl2_ref,    # [HID, OUT]     f32
    wr2_ref,    # [HID, OUT]     f32
    b2_ref,     # [1, OUT]       f32
    o_ref,      # [N_pad, OUT]   f32   resident output, written in phase 1
    h_scr,      # [N_pad, HID]   f32   VMEM scratch: relu(conv1(x))
    z_scr,      # [N_pad, OUT]   bf16  VMEM scratch: h @ W_l2
    *,
    block_m,
    out_real,
):
    phase = pl.program_id(0)
    m = pl.program_id(1)
    row0 = pl.multiple_of(m * block_m, block_m)

    dinv_rows = dinv_ref[pl.ds(row0, block_m), :]          # [TM, 1]

    @pl.when(phase == 0)
    def _layer1():
        # agg1 = diag(1/deg) @ A[rows, :] @ X   (bf16 MXU, f32 accumulate)
        x_bf = x_ref[...].astype(jnp.bfloat16)
        agg1 = jnp.dot(a_ref[...], x_bf, preferred_element_type=jnp.float32)
        agg1 = agg1 * dinv_rows
        x_rows = x_ref[pl.ds(row0, block_m), :]
        h = (
            jnp.dot(agg1, wl1_ref[...], preferred_element_type=jnp.float32)
            + jnp.dot(x_rows, wr1_ref[...], preferred_element_type=jnp.float32)
            + b1_ref[...]
        )
        h = jnp.maximum(h, 0.0)
        h_scr[pl.ds(row0, block_m), :] = h
        # Associativity: pre-project through W_l2 now so the phase-1 N^2-scaled
        # aggregation matmul runs at the (smaller) output width.
        z_scr[pl.ds(row0, block_m), :] = jnp.dot(
            h, wl2_ref[...], preferred_element_type=jnp.float32
        ).astype(z_scr.dtype)

    @pl.when(phase == 1)
    def _layer2():
        # agg2 = diag(1/deg) @ A[rows, :] @ (h @ W_l2)
        agg2 = jnp.dot(a_ref[...], z_scr[...], preferred_element_type=jnp.float32)
        agg2 = agg2 * dinv_rows
        h_rows = h_scr[pl.ds(row0, block_m), :]
        logits = (
            agg2
            + jnp.dot(h_rows, wr2_ref[...], preferred_element_type=jnp.float32)
            + b2_ref[...]
        )
        # Mask lane padding so log_softmax normalizes over the real classes only.
        col = jax.lax.broadcasted_iota(jnp.int32, logits.shape, 1)
        logits = jnp.where(col < out_real, logits, -1e30)
        mx = jnp.max(logits, axis=1, keepdims=True)
        s = logits - mx
        lse = jnp.log(jnp.sum(jnp.exp(s), axis=1, keepdims=True))
        o_ref[pl.ds(row0, block_m), :] = (s - lse).astype(o_ref.dtype)


def build_mean_adjacency(edge_index, num_nodes):
    """Dense in-edge counts A[i, j] = #edges j->i, plus 1/deg_in (f32)."""
    src = edge_index[0]
    dst = edge_index[1]
    a = jnp.zeros((num_nodes, num_nodes), jnp.float32)
    a = a.at[dst, src].add(1.0)        # duplicate edges counted (matches scatter-mean)
    deg = jnp.sum(a, axis=1, keepdims=True)
    deg_inv = jnp.where(deg > 0, 1.0 / deg, 0.0)
    return a, deg_inv


def graphsage_forward(x, edge_index, params, *, block_m=None):
    n, fin = x.shape
    hidden = params["w_l1"].shape[1]
    out_c = params["w_l2"].shape[1]

    # ---- tiling / padding choices ------------------------------------------
    if block_m is None:
        block_m = 256
    block_m = max(16, _round_up(block_m, 16))       # bf16 sublane tile = 16
    n_pad = _round_up(max(n, block_m), block_m)
    hid_pad = _round_up(hidden, 128)                # lane-dense intermediates
    out_pad = _round_up(out_c, 128)                 # lane-dense output stores
    n_tiles = n_pad // block_m

    # ---- build (padded) dense aggregation operands in plain JAX glue -------
    a_counts, deg_inv = build_mean_adjacency(edge_index, n)
    a_pad = jnp.zeros((n_pad, n_pad), jnp.bfloat16)
    a_pad = a_pad.at[:n, :n].set(a_counts.astype(jnp.bfloat16))   # small ints: exact
    dinv_pad = jnp.zeros((n_pad, 1), jnp.float32).at[:n, :].set(deg_inv)
    x_pad = jnp.zeros((n_pad, fin), jnp.float32).at[:n, :].set(x)

    def pad2(w, rows, cols):
        return jnp.zeros((rows, cols), jnp.float32).at[: w.shape[0], : w.shape[1]].set(w)

    wl1 = pad2(params["w_l1"], fin, hid_pad)
    wr1 = pad2(params["w_r1"], fin, hid_pad)
    b1 = pad2(params["b1"], 1, hid_pad)
    wl2 = pad2(params["w_l2"], hid_pad, out_pad)
    wr2 = pad2(params["w_r2"], hid_pad, out_pad)
    b2 = pad2(params["b2"], 1, out_pad)

    kernel = functools.partial(_fused_graphsage_kernel, block_m=block_m, out_real=out_c)

    const = lambda p, m: (0, 0)   # resident operands: DMA'd once, stay in VMEM
    grid_spec = pltpu.PrefetchScalarGridSpec(
        num_scalar_prefetch=0,
        grid=(2, n_tiles),                                      # (phase, row tile)
        in_specs=[
            pl.BlockSpec((block_m, n_pad), lambda p, m: (m, 0)),  # A: streamed/pipelined
            pl.BlockSpec((n_pad, fin), const),                    # X
            pl.BlockSpec((n_pad, 1), const),                      # 1/deg
            pl.BlockSpec((fin, hid_pad), const),                  # W_l1
            pl.BlockSpec((fin, hid_pad), const),                  # W_r1
            pl.BlockSpec((1, hid_pad), const),                    # b1
            pl.BlockSpec((hid_pad, out_pad), const),              # W_l2
            pl.BlockSpec((hid_pad, out_pad), const),              # W_r2
            pl.BlockSpec((1, out_pad), const),                    # b2
        ],
        out_specs=pl.BlockSpec((n_pad, out_pad), const),          # resident output
        scratch_shapes=[
            pltpu.VMEM((n_pad, hid_pad), jnp.float32),            # h
            pltpu.VMEM((n_pad, out_pad), jnp.bfloat16),           # z = h @ W_l2
        ],
    )

    out_full = pl.pallas_call(
        kernel,
        out_shape=jax.ShapeDtypeStruct((n_pad, out_pad), jnp.float32),
        grid_spec=grid_spec,
        compiler_params=pltpu.CompilerParams(
            # Phase 1 reads scratch produced by *all* phase-0 row tiles, so
            # neither grid axis may be sharded across TensorCores.
            dimension_semantics=("arbitrary", "arbitrary"),
            vmem_limit_bytes=64 * 1024 * 1024,   # explicit: fits v7x's 64 MiB VMEM
        ),
    )(a_pad, x_pad, dinv_pad, wl1, wr1, b1, wl2, wr2, b2)

    return out_full[:n, :out_c]


def graphsage_reference(x, edge_index, params):
    """Pure-JAX reference of the same forward pass (f32 throughout)."""
    a, dinv = build_mean_adjacency(edge_index, x.shape[0])
    agg1 = (a @ x) * dinv
    h = jnp.maximum(agg1 @ params["w_l1"] + x @ params["w_r1"] + params["b1"], 0.0)
    agg2 = (a @ h) * dinv
    logits = agg2 @ params["w_l2"] + h @ params["w_r2"] + params["b2"]
    return jax.nn.log_softmax(logits, axis=1)


def init_params(key, in_channels, hidden_channels, out_channels):
    ks = jax.random.split(key, 6)

    def lin(k, fin, fout):
        bound = 1.0 / jnp.sqrt(fin)
        return jax.random.uniform(k, (fin, fout), jnp.float32, -bound, bound)

    return {
        "w_l1": lin(ks[0], in_channels, hidden_channels),
        "w_r1": lin(ks[1], in_channels, hidden_channels),
        "b1": jax.random.uniform(
            ks[2], (1, hidden_channels), jnp.float32,
            -1.0 / jnp.sqrt(in_channels), 1.0 / jnp.sqrt(in_channels)),
        "w_l2": lin(ks[3], hidden_channels, out_channels),
        "w_r2": lin(ks[4], hidden_channels, out_channels),
        "b2": jax.random.uniform(
            ks[5], (1, out_channels), jnp.float32,
            -1.0 / jnp.sqrt(hidden_channels), 1.0 / jnp.sqrt(hidden_channels)),
    }


if __name__ == "__main__":
    key = jax.random.PRNGKey(0)
    k_x, k_e, k_p = jax.random.split(key, 3)

    num_nodes, num_edges = 24, 64
    in_channels, hidden_channels, out_channels = 4, 32, 8

    x = jax.random.normal(k_x, (num_nodes, in_channels), jnp.float32)
    edge_index = jax.random.randint(k_e, (2, num_edges), 0, num_nodes, jnp.int32)
    params = init_params(k_p, in_channels, hidden_channels, out_channels)

    # block_m=16 -> N padded to 32, grid = (2 phases, 2 row tiles)
    out = graphsage_forward(x, edge_index, params, block_m=16)
    out = jax.block_until_ready(out)

    assert out.shape == (num_nodes, out_channels)
    # rows of log_softmax must sum to 1 in probability space
    assert jnp.allclose(jnp.sum(jnp.exp(out), axis=1), 1.0, atol=1e-3)
    # match the pure-JAX reference (bf16 aggregation operands -> loose tolerance)
    ref = graphsage_reference(x, edge_index, params)
    assert jnp.allclose(out, ref, atol=5e-2, rtol=5e-2), float(jnp.max(jnp.abs(out - ref)))
    print("KERNEL_OK")
</pallas_src>

<mosaic_0001>
module attributes {stable_mosaic.version = 11 : i64} {
  func.func @_fused_graphsage_kernel(%arg0: i32, %arg1: i32, %arg2: memref<16x32xbf16, #tpu.memory_space<vmem>>, %arg3: memref<32x4xf32, #tpu.memory_space<vmem>>, %arg4: memref<32x1xf32, #tpu.memory_space<vmem>>, %arg5: memref<4x128xf32, #tpu.memory_space<vmem>>, %arg6: memref<4x128xf32, #tpu.memory_space<vmem>>, %arg7: memref<1x128xf32, #tpu.memory_space<vmem>>, %arg8: memref<128x128xf32, #tpu.memory_space<vmem>>, %arg9: memref<128x128xf32, #tpu.memory_space<vmem>>, %arg10: memref<1x128xf32, #tpu.memory_space<vmem>>, %arg11: memref<32x128xf32, #tpu.memory_space<vmem>>, %arg12: memref<32x128xf32, #tpu.memory_space<vmem>>, %arg13: memref<32x128xbf16, #tpu.memory_space<vmem>>) attributes {dimension_semantics = [#tpu.dimension_semantics<arbitrary>, #tpu.dimension_semantics<arbitrary>], iteration_bounds = array<i64: 2, 2>, scalar_prefetch = 0 : i64, scratch_operands = 2 : i64, tpu.core_type = #tpu.core_type<tc>, window_params = [{transform_indices = @transform_0, window_bounds = array<i64: 16, 32>}, {pipeline_mode = #tpu.pipeline_mode<synchronous>, transform_indices = @transform_1, window_bounds = array<i64: 32, 4>}, {pipeline_mode = #tpu.pipeline_mode<synchronous>, transform_indices = @transform_2, window_bounds = array<i64: 32, 1>}, {pipeline_mode = #tpu.pipeline_mode<synchronous>, transform_indices = @transform_3, window_bounds = array<i64: 4, 128>}, {pipeline_mode = #tpu.pipeline_mode<synchronous>, transform_indices = @transform_4, window_bounds = array<i64: 4, 128>}, {pipeline_mode = #tpu.pipeline_mode<synchronous>, transform_indices = @transform_5, window_bounds = array<i64: 1, 128>}, {pipeline_mode = #tpu.pipeline_mode<synchronous>, transform_indices = @transform_6, window_bounds = array<i64: 128, 128>}, {pipeline_mode = #tpu.pipeline_mode<synchronous>, transform_indices = @transform_7, window_bounds = array<i64: 128, 128>}, {pipeline_mode = #tpu.pipeline_mode<synchronous>, transform_indices = @transform_8, window_bounds = array<i64: 1, 128>}, {pipeline_mode = #tpu.pipeline_mode<synchronous>, transform_indices = @transform_9, window_bounds = array<i64: 32, 128>}]} {
    %c16_i32 = arith.constant 16 : i32
    %0 = arith.muli %arg1, %c16_i32 : i32
    %1 = tpu.assume_multiple %0, 16 : i32
    %2 = arith.index_cast %1 : i32 to index
    %c0 = arith.constant 0 : index
    %3 = vector.load %arg4[%2, %c0] : memref<32x1xf32, #tpu.memory_space<vmem>>, vector<16x1xf32>
    %c0_i32 = arith.constant 0 : i32
    %4 = arith.cmpi eq, %arg0, %c0_i32 : i32
    %5 = arith.extui %4 : i1 to i32
    %c0_i32_0 = arith.constant 0 : i32
    %6 = arith.cmpi ne, %5, %c0_i32_0 : i32
    scf.if %6 {
      %c0_2 = arith.constant 0 : index
      %c0_3 = arith.constant 0 : index
      %10 = vector.load %arg3[%c0_2, %c0_3] : memref<32x4xf32, #tpu.memory_space<vmem>>, vector<32x4xf32>
      %11 = arith.truncf %10 : vector<32x4xf32> to vector<32x4xbf16>
      %c0_4 = arith.constant 0 : index
      %c0_5 = arith.constant 0 : index
      %12 = vector.load %arg2[%c0_4, %c0_5] : memref<16x32xbf16, #tpu.memory_space<vmem>>, vector<16x32xbf16>
      %cst = arith.constant dense<0.000000e+00> : vector<16x4xf32>
      %13 = tpu.matmul %12, %11, %cst {dimension_numbers = #tpu.dot_dimension_numbers<[1], [0], [0], [1], [0, 0, 1, 1], [], []>} : vector<16x32xbf16>, vector<32x4xbf16>, vector<16x4xf32> -> vector<16x4xf32>
      %14 = vector.broadcast %3 : vector<16x1xf32> to vector<16x4xf32>
      %15 = arith.mulf %13, %14 : vector<16x4xf32>
      %16 = arith.index_cast %1 : i32 to index
      %c0_6 = arith.constant 0 : index
      %17 = vector.load %arg3[%16, %c0_6] : memref<32x4xf32, #tpu.memory_space<vmem>>, vector<16x4xf32>
      %c0_7 = arith.constant 0 : index
      %c0_8 = arith.constant 0 : index
      %18 = vector.load %arg5[%c0_7, %c0_8] : memref<4x128xf32, #tpu.memory_space<vmem>>, vector<4x128xf32>
      %cst_9 = arith.constant dense<0.000000e+00> : vector<16x128xf32>
      %19 = tpu.matmul %15, %18, %cst_9 {dimension_numbers = #tpu.dot_dimension_numbers<[1], [0], [0], [1], [0, 0, 1, 1], [], []>} : vector<16x4xf32>, vector<4x128xf32>, vector<16x128xf32> -> vector<16x128xf32>
      %c0_10 = arith.constant 0 : index
      %c0_11 = arith.constant 0 : index
      %20 = vector.load %arg6[%c0_10, %c0_11] : memref<4x128xf32, #tpu.memory_space<vmem>>, vector<4x128xf32>
      %cst_12 = arith.constant dense<0.000000e+00> : vector<16x128xf32>
      %21 = tpu.matmul %17, %20, %cst_12 {dimension_numbers = #tpu.dot_dimension_numbers<[1], [0], [0], [1], [0, 0, 1, 1], [], []>} : vector<16x4xf32>, vector<4x128xf32>, vector<16x128xf32> -> vector<16x128xf32>
      %22 = arith.addf %19, %21 : vector<16x128xf32>
      %c0_13 = arith.constant 0 : index
      %c0_14 = arith.constant 0 : index
      %23 = vector.load %arg7[%c0_13, %c0_14] : memref<1x128xf32, #tpu.memory_space<vmem>>, vector<1x128xf32>
      %24 = vector.broadcast %23 : vector<1x128xf32> to vector<16x128xf32>
      %25 = arith.addf %22, %24 : vector<16x128xf32>
      %cst_15 = arith.constant 0.000000e+00 : f32
      %26 = vector.broadcast %cst_15 : f32 to vector<16x128xf32>
      %27 = arith.maximumf %25, %26 : vector<16x128xf32>
      %28 = arith.index_cast %1 : i32 to index
      %c0_16 = arith.constant 0 : index
      %29 = vector.load %arg12[%28, %c0_16] : memref<32x128xf32, #tpu.memory_space<vmem>>, vector<16x128xf32>
      tpu.vector_store %arg12[%28, %c0_16], %27 {strides = array<i32>} : memref<32x128xf32, #tpu.memory_space<vmem>>, vector<16x128xf32>,
      %c0_17 = arith.constant 0 : index
      %c0_18 = arith.constant 0 : index
      %30 = vector.load %arg8[%c0_17, %c0_18] : memref<128x128xf32, #tpu.memory_space<vmem>>, vector<128x128xf32>
      %cst_19 = arith.constant dense<0.000000e+00> : vector<16x128xf32>
      %31 = tpu.matmul %27, %30, %cst_19 {dimension_numbers = #tpu.dot_dimension_numbers<[1], [0], [0], [1], [0, 0, 1, 1], [], []>} : vector<16x128xf32>, vector<128x128xf32>, vector<16x128xf32> -> vector<16x128xf32>
      %32 = arith.truncf %31 : vector<16x128xf32> to vector<16x128xbf16>
      %33 = arith.index_cast %1 : i32 to index
      %c0_20 = arith.constant 0 : index
      %34 = vector.load %arg13[%33, %c0_20] : memref<32x128xbf16, #tpu.memory_space<vmem>>, vector<16x128xbf16>
      tpu.vector_store %arg13[%33, %c0_20], %32 {strides = array<i32>} : memref<32x128xbf16, #tpu.memory_space<vmem>>, vector<16x128xbf16>,
    } else {
    }
    %c1_i32 = arith.constant 1 : i32
    %7 = arith.cmpi eq, %arg0, %c1_i32 : i32
    %8 = arith.extui %7 : i1 to i32
    %c0_i32_1 = arith.constant 0 : i32
    %9 = arith.cmpi ne, %8, %c0_i32_1 : i32
    scf.if %9 {
      %c0_2 = arith.constant 0 : index
      %c0_3 = arith.constant 0 : index
      %10 = vector.load %arg2[%c0_2, %c0_3] : memref<16x32xbf16, #tpu.memory_space<vmem>>, vector<16x32xbf16>
      %c0_4 = arith.constant 0 : index
      %c0_5 = arith.constant 0 : index
      %11 = vector.load %arg13[%c0_4, %c0_5] : memref<32x128xbf16, #tpu.memory_space<vmem>>, vector<32x128xbf16>
      %cst = arith.constant dense<0.000000e+00> : vector<16x128xf32>
      %12 = tpu.matmul %10, %11, %cst {dimension_numbers = #tpu.dot_dimension_numbers<[1], [0], [0], [1], [0, 0, 1, 1], [], []>} : vector<16x32xbf16>, vector<32x128xbf16>, vector<16x128xf32> -> vector<16x128xf32>
      %13 = vector.broadcast %3 : vector<16x1xf32> to vector<16x128xf32>
      %14 = arith.mulf %12, %13 : vector<16x128xf32>
      %15 = arith.index_cast %1 : i32 to index
      %c0_6 = arith.constant 0 : index
      %16 = vector.load %arg12[%15, %c0_6] : memref<32x128xf32, #tpu.memory_space<vmem>>, vector<16x128xf32>
      %c0_7 = arith.constant 0 : index
      %c0_8 = arith.constant 0 : index
      %17 = vector.load %arg9[%c0_7, %c0_8] : memref<128x128xf32, #tpu.memory_space<vmem>>, vector<128x128xf32>
      %cst_9 = arith.constant dense<0.000000e+00> : vector<16x128xf32>
      %18 = tpu.matmul %16, %17, %cst_9 {dimension_numbers = #tpu.dot_dimension_numbers<[1], [0], [0], [1], [0, 0, 1, 1], [], []>} : vector<16x128xf32>, vector<128x128xf32>, vector<16x128xf32> -> vector<16x128xf32>
      %19 = arith.addf %14, %18 : vector<16x128xf32>
      %c0_10 = arith.constant 0 : index
      %c0_11 = arith.constant 0 : index
      %20 = vector.load %arg10[%c0_10, %c0_11] : memref<1x128xf32, #tpu.memory_space<vmem>>, vector<1x128xf32>
      %21 = vector.broadcast %20 : vector<1x128xf32> to vector<16x128xf32>
      %22 = arith.addf %19, %21 : vector<16x128xf32>
      %23 = tpu.iota {dimensions = array<i32: 1>} : vector<16x128xi32>
      %c8_i32 = arith.constant 8 : i32
      %24 = vector.broadcast %c8_i32 : i32 to vector<16x128xi32>
      %25 = arith.cmpi slt, %23, %24 : vector<16x128xi32>
      %cst_12 = arith.constant -1.000000e+30 : f32
      %26 = vector.broadcast %cst_12 : f32 to vector<16x128xf32>
      %27 = arith.select %25, %22, %26 : vector<16x128xi1>, vector<16x128xf32>
      %cst_13 = arith.constant dense<0xFF800000> : vector<16xf32>
      %28 = vector.multi_reduction <maximumf>, %27, %cst_13 [1] : vector<16x128xf32> to vector<16xf32>
      %29 = vector.shape_cast %28 : vector<16xf32> to vector<16x1xf32>
      %30 = vector.broadcast %29 : vector<16x1xf32> to vector<16x128xf32>
      %31 = arith.subf %27, %30 : vector<16x128xf32>
      %32 = math.exp %31 : vector<16x128xf32>
      %cst_14 = arith.constant dense<0.000000e+00> : vector<16xf32>
      %33 = vector.multi_reduction <add>, %32, %cst_14 [1] : vector<16x128xf32> to vector<16xf32>
      %34 = vector.shape_cast %33 : vector<16xf32> to vector<16x1xf32>
      %35 = math.log %34 : vector<16x1xf32>
      %36 = vector.broadcast %35 : vector<16x1xf32> to vector<16x128xf32>
      %37 = arith.subf %31, %36 : vector<16x128xf32>
      %38 = arith.index_cast %1 : i32 to index
      %c0_15 = arith.constant 0 : index
      %39 = vector.load %arg11[%38, %c0_15] : memref<32x128xf32, #tpu.memory_space<vmem>>, vector<16x128xf32>
      tpu.vector_store %arg11[%38, %c0_15], %37 {strides = array<i32>} : memref<32x128xf32, #tpu.memory_space<vmem>>, vector<16x128xf32>,
    } else {
    }
    return
  }
  func.func @transform_0(%arg0: i32, %arg1: i32) -> (i32, i32) {
    %c0_i32 = arith.constant 0 : i32
    %c0_i32_0 = arith.constant 0 : i32
    return %arg1, %c0_i32 : i32, i32
  }
  func.func @transform_1(%arg0: i32, %arg1: i32) -> (i32, i32) {
    %c0_i32 = arith.constant 0 : i32
    %c0_i32_0 = arith.constant 0 : i32
    %c0_i32_1 = arith.constant 0 : i32
    return %c0_i32, %c0_i32_0 : i32, i32
  }
  func.func @transform_2(%arg0: i32, %arg1: i32) -> (i32, i32) {
    %c0_i32 = arith.constant 0 : i32
    %c0_i32_0 = arith.constant 0 : i32
    %c0_i32_1 = arith.constant 0 : i32
    return %c0_i32, %c0_i32_0 : i32, i32
  }
  func.func @transform_3(%arg0: i32, %arg1: i32) -> (i32, i32) {
    %c0_i32 = arith.constant 0 : i32
    %c0_i32_0 = arith.constant 0 : i32
    %c0_i32_1 = arith.constant 0 : i32
    return %c0_i32, %c0_i32_0 : i32, i32
  }
  func.func @transform_4(%arg0: i32, %arg1: i32) -> (i32, i32) {
    %c0_i32 = arith.constant 0 : i32
    %c0_i32_0 = arith.constant 0 : i32
    %c0_i32_1 = arith.constant 0 : i32
    return %c0_i32, %c0_i32_0 : i32, i32
  }
  func.func @transform_5(%arg0: i32, %arg1: i32) -> (i32, i32) {
    %c0_i32 = arith.constant 0 : i32
    %c0_i32_0 = arith.constant 0 : i32
    %c0_i32_1 = arith.constant 0 : i32
    return %c0_i32, %c0_i32_0 : i32, i32
  }
  func.func @transform_6(%arg0: i32, %arg1: i32) -> (i32, i32) {
    %c0_i32 = arith.constant 0 : i32
    %c0_i32_0 = arith.constant 0 : i32
    %c0_i32_1 = arith.constant 0 : i32
    return %c0_i32, %c0_i32_0 : i32, i32
  }
  func.func @transform_7(%arg0: i32, %arg1: i32) -> (i32, i32) {
    %c0_i32 = arith.constant 0 : i32
    %c0_i32_0 = arith.constant 0 : i32
    %c0_i32_1 = arith.constant 0 : i32
    return %c0_i32, %c0_i32_0 : i32, i32
  }
  func.func @transform_8(%arg0: i32, %arg1: i32) -> (i32, i32) {
    %c0_i32 = arith.constant 0 : i32
    %c0_i32_0 = arith.constant 0 : i32
    %c0_i32_1 = arith.constant 0 : i32
    return %c0_i32, %c0_i32_0 : i32, i32
  }
  func.func @transform_9(%arg0: i32, %arg1: i32) -> (i32, i32) {
    %c0_i32 = arith.constant 0 : i32
    %c0_i32_0 = arith.constant 0 : i32
    %c0_i32_1 = arith.constant 0 : i32
    return %c0_i32, %c0_i32_0 : i32, i32
  }
}

</mosaic_0001>

<llo_original>
// kernel: tpu_custom_call.1
$region0: #{tpu_custom_call.1}
  #allocation0 [shape = 'u32[]', space=smem, size = 0x4, offset = 0x4, fixed_abs, tag = 'smem constant byte address 0x4 - core index']
  #allocation1 [shape = 'u32[144,128]{1,0:T(1,128)}', space=vmem, size = 0x12000, scoped, tag = 'internal scratch']
  #allocation2 [shape = 'f32[32,128]{1,0:T(8,128)}', space=vmem, size = 0x4000, scoped, tag = 'scratch operand']
  #allocation3 [shape = 'bf16[32,128]{1,0:T(16,128)(2,1)}', space=vmem, size = 0x2000, scoped, tag = 'scratch operand']
  %s0 = inlined_call_operand.hbm [shape: bf16[32,32], index: 0, kind: input, shape index: {}]
  %s1 = inlined_call_operand.hbm [shape: f32[32,4], index: 1, kind: input, shape index: {}]
  %s2 = inlined_call_operand.hbm [shape: f32[32,1], index: 2, kind: input, shape index: {}]
  %s3 = inlined_call_operand.hbm [shape: f32[4,128], index: 3, kind: input, shape index: {}]
  %s4 = inlined_call_operand.hbm [shape: f32[4,128], index: 4, kind: input, shape index: {}]
  %s5 = inlined_call_operand.hbm [shape: f32[1,128], index: 5, kind: input, shape index: {}]
  %s6 = inlined_call_operand.hbm [shape: f32[128,128], index: 6, kind: input, shape index: {}]
  %s7 = inlined_call_operand.hbm [shape: f32[128,128], index: 7, kind: input, shape index: {}]
  %s8 = inlined_call_operand.hbm [shape: f32[1,128], index: 8, kind: input, shape index: {}]
  %s9 = inlined_call_operand.hbm [shape: f32[32,128], index: 9, kind: output, shape index: {}]
  %s10 = sld [smem:[#allocation0]]
  $region113: #{tpu_custom_call.1} parent=0
    _
  %s12 = ssub.s32 1, %s10
  %s13 = scalar_select 0, %s12, %s10
  $region1: #{tpu_custom_call.1} parent=0
    #allocation4 [shape = 'u8[8192]{0}', space=vmem, size = 0x2000, scoped, tag = 'input window, operand 0']
    #allocation5 [shape = 's32[2]{0}', space=sflag, size = 0x8, scoped, tag = 'scoped memory for tpu_custom_call.1']
    #allocation6 [shape = 's32[2]{0}', space=sflag, size = 0x8, scoped, tag = 'scoped memory for tpu_custom_call.1']
    #allocation7 [shape = 'u8[16384]{0}', space=vmem, size = 0x4000, scoped, tag = 'input window, operand 1, single buffered']
    #allocation8 [shape = 's32[1]{0}', space=sflag, size = 0x4, scoped, tag = 'scoped memory for tpu_custom_call.1']
    #allocation9 [shape = 'u8[16384]{0}', space=vmem, size = 0x4000, scoped, tag = 'input window, operand 2, single buffered']
    #allocation10 [shape = 'u8[2048]{0}', space=vmem, size = 0x800, scoped, tag = 'input window, operand 3, single buffered']
    #allocation11 [shape = 's32[1]{0}', space=sflag, size = 0x4, scoped, tag = 'scoped memory for tpu_custom_call.1']
    #allocation12 [shape = 'u8[2048]{0}', space=vmem, size = 0x800, scoped, tag = 'input window, operand 4, single buffered']
    #allocation13 [shape = 'u8[512]{0}', space=vmem, size = 0x400, scoped, tag = 'input window, operand 5, single buffered']
    #allocation14 [shape = 's32[1]{0}', space=sflag, size = 0x4, scoped, tag = 'scoped memory for tpu_custom_call.1']
    #allocation15 [shape = 'u8[65536]{0}', space=vmem, size = 0x10000, scoped, tag = 'input window, operand 6, single buffered']
    #allocation16 [shape = 'u8[65536]{0}', space=vmem, size = 0x10000, scoped, tag = 'input window, operand 7, single buffered']
    #allocation17 [shape = 's32[1]{0}', space=sflag, size = 0x4, scoped, tag = 'scoped memory for tpu_custom_call.1']
    #allocation18 [shape = 'u8[512]{0}', space=vmem, size = 0x400, scoped, tag = 'input window, operand 8, single buffered']
    #allocation19 [shape = 'u8[16384]{0}', space=vmem, size = 0x4000, scoped, tag = 'output window, operand 0, single buffered']
    %14 = vsyncpa [#allocation5], 0
    %s15 = scalar_lea.sflag [#allocation5], 1
    %16 = vsyncpa %s15, 0
    %17 = vsyncpa [#allocation8], 0
    %18 = vsyncpa [#allocation11], 0
    %19 = vsyncpa [#allocation14], 0
    %20 = vsyncpa [#allocation17], 0
    %21 = vsyncpa [#allocation6], 0
    loop: start=0, step=1, limit=6
    $region2: #{tpu_custom_call.1} parent=1 // loop_pre_header
      _
    $region3: #{tpu_custom_call.1} parent=1 // loop_header
      %s23 = sphi 0, %s27
      %p24 = scmp.ge.s32.totalorder %s23, 6
      %s30 = sphi 0, %s42
      %s31 = sphi 0, %s38
      %s32 = sphi 0, %s30
      %s33 = sphi 0, %s31
      %s34 = sphi 0, %s32
      %s35 = sphi 0, %s33
      %s45 = sphi 0, %s47
      %s48 = sphi 0, %s45
      %s49 = sphi 0, %s48
      %s65 = sphi 0, %s49
      %s69 = sphi 0, %s69
      %s71 = sphi 0, %s69
      %s72 = sphi 0, %s71
      %s86 = sphi 0, %s72
      %s90 = sphi 0, %s90
      %s92 = sphi 0, %s90
      %s93 = sphi 0, %s92
      %s107 = sphi 0, %s93
      %s111 = sphi 0, %s111
      %s113 = sphi 0, %s111
      %s114 = sphi 0, %s113
      %s128 = sphi 0, %s114
      %s132 = sphi 0, %s132
      %s134 = sphi 0, %s132
      %s135 = sphi 0, %s134
      %s149 = sphi 0, %s135
      %s153 = sphi 0, %s153
      %s155 = sphi 0, %s153
      %s156 = sphi 0, %s155
      %s170 = sphi 0, %s156
      %s174 = sphi 0, %s174
      %s176 = sphi 0, %s174
      %s177 = sphi 0, %s176
      %s191 = sphi 0, %s177
      %s195 = sphi 0, %s195
      %s197 = sphi 0, %s195
      %s198 = sphi 0, %s197
      %s212 = sphi 0, %s198
      %s216 = sphi 0, %s216
      %s218 = sphi 0, %s216
      %s219 = sphi 0, %s218
      %s233 = sphi 0, %s219
      %s237 = sphi 0, %s237
      %s239 = sphi 0, %s237
      %s240 = sphi 0, %s239
      %s254 = sphi 0, %s240
    $region4: #{tpu_custom_call.1} parent=1 // loop_header_branch
      %26 = sbr.rel (%p24) target = $region8
    $region5: #{tpu_custom_call.1} parent=1 // loop_body
      %s28 = ssub.s32 %s23, 1
      %s29 = ssub.s32 %s23, 2
      %s36 = sadd.s32 1, %s31
      %p37 = scmp.ge.s32.totalorder %s36, 2
      %s38 = scalar_select %p37, 0, %s36
      %s39 = sadd.s32 1, %s30
      %s40 = scalar_select %p37, %s39, %s30
      %p41 = scmp.ge.s32.totalorder %s40, 2
      %s42 = scalar_select %p41, 0, %s40
      %s43 = ssub.s32 %s31, %s38
      %p44 = scmp.eq.s32.totalorder %s43, 0
      %s46 = sadd.s32 %s45, 1
      %s47 = scalar_select %p44, %s45, %s46
      %p50 = pneg %p44
      %p51 = scmp.eq.s32.totalorder %s23, 3
      %p52 = por %p50, %p51
      %p53 = scmp.ne.s32.totalorder %s45, %s48
      %p54 = scmp.eq.s32.totalorder %s23, 0
      %p55 = por %p53, %p54
      %p56 = scmp.ne.s32.totalorder %s45, %s48
      %p57 = scmp.eq.s32.totalorder %s28, 3
      %p58 = por %p56, %p57
      %p59 = scmp.ne.s32.totalorder %s48, %s49
      %p60 = scmp.eq.s32.totalorder %s28, 0
      %p61 = por %p59, %p60
      %p62 = scmp.ne.s32.totalorder %s48, %s49
      %p63 = scmp.eq.s32.totalorder %s29, 3
      %p64 = por %p62, %p63
      %p66 = scmp.ne.s32.totalorder %s49, %s65
      %p67 = scmp.eq.s32.totalorder %s29, 0
      %p68 = por %p66, %p67
      %s70 = sadd.s32 %s69, 1
      %p73 = scmp.eq.s32.totalorder %s23, 3
      %p74 = scmp.ne.s32.totalorder %s69, %s71
      %p75 = scmp.eq.s32.totalorder %s23, 0
      %p76 = por %p74, %p75
      %p77 = scmp.ne.s32.totalorder %s69, %s71
      %p78 = scmp.eq.s32.totalorder %s28, 3
      %p79 = por %p77, %p78
      %p80 = scmp.ne.s32.totalorder %s71, %s72
      %p81 = scmp.eq.s32.totalorder %s28, 0
      %p82 = por %p80, %p81
      %p83 = scmp.ne.s32.totalorder %s71, %s72
      %p84 = scmp.eq.s32.totalorder %s29, 3
      %p85 = por %p83, %p84
      %p87 = scmp.ne.s32.totalorder %s72, %s86
      %p88 = scmp.eq.s32.totalorder %s29, 0
      %p89 = por %p87, %p88
      %s91 = sadd.s32 %s90, 1
      %p94 = scmp.eq.s32.totalorder %s23, 3
      %p95 = scmp.ne.s32.totalorder %s90, %s92
      %p96 = scmp.eq.s32.totalorder %s23, 0
      %p97 = por %p95, %p96
      %p98 = scmp.ne.s32.totalorder %s90, %s92
      %p99 = scmp.eq.s32.totalorder %s28, 3
      %p100 = por %p98, %p99
      %p101 = scmp.ne.s32.totalorder %s92, %s93
      %p102 = scmp.eq.s32.totalorder %s28, 0
      %p103 = por %p101, %p102
      %p104 = scmp.ne.s32.totalorder %s92, %s93
      %p105 = scmp.eq.s32.totalorder %s29, 3
      %p106 = por %p104, %p105
      %p108 = scmp.ne.s32.totalorder %s93, %s107
      %p109 = scmp.eq.s32.totalorder %s29, 0
      %p110 = por %p108, %p109
      %s112 = sadd.s32 %s111, 1
      %p115 = scmp.eq.s32.totalorder %s23, 3
      %p116 = scmp.ne.s32.totalorder %s111, %s113
      %p117 = scmp.eq.s32.totalorder %s23, 0
      %p118 = por %p116, %p117
      %p119 = scmp.ne.s32.totalorder %s111, %s113
      %p120 = scmp.eq.s32.totalorder %s28, 3
      %p121 = por %p119, %p120
      %p122 = scmp.ne.s32.totalorder %s113, %s114
      %p123 = scmp.eq.s32.totalorder %s28, 0
      %p124 = por %p122, %p123
      %p125 = scmp.ne.s32.totalorder %s113, %s114
      %p126 = scmp.eq.s32.totalorder %s29, 3
      %p127 = por %p125, %p126
      %p129 = scmp.ne.s32.totalorder %s114, %s128
      %p130 = scmp.eq.s32.totalorder %s29, 0
      %p131 = por %p129, %p130
      %s133 = sadd.s32 %s132, 1
      %p136 = scmp.eq.s32.totalorder %s23, 3
      %p137 = scmp.ne.s32.totalorder %s132, %s134
      %p138 = scmp.eq.s32.totalorder %s23, 0
      %p139 = por %p137, %p138
      %p140 = scmp.ne.s32.totalorder %s132, %s134
      %p141 = scmp.eq.s32.totalorder %s28, 3
      %p142 = por %p140, %p141
      %p143 = scmp.ne.s32.totalorder %s134, %s135
      %p144 = scmp.eq.s32.totalorder %s28, 0
      %p145 = por %p143, %p144
      %p146 = scmp.ne.s32.totalorder %s134, %s135
      %p147 = scmp.eq.s32.totalorder %s29, 3
      %p148 = por %p146, %p147
      %p150 = scmp.ne.s32.totalorder %s135, %s149
      %p151 = scmp.eq.s32.totalorder %s29, 0
      %p152 = por %p150, %p151
      %s154 = sadd.s32 %s153, 1
      %p157 = scmp.eq.s32.totalorder %s23, 3
      %p158 = scmp.ne.s32.totalorder %s153, %s155
      %p159 = scmp.eq.s32.totalorder %s23, 0
      %p160 = por %p158, %p159
      %p161 = scmp.ne.s32.totalorder %s153, %s155
      %p162 = scmp.eq.s32.totalorder %s28, 3
      %p163 = por %p161, %p162
      %p164 = scmp.ne.s32.totalorder %s155, %s156
      %p165 = scmp.eq.s32.totalorder %s28, 0
      %p166 = por %p164, %p165
      %p167 = scmp.ne.s32.totalorder %s155, %s156
      %p168 = scmp.eq.s32.totalorder %s29, 3
      %p169 = por %p167, %p168
      %p171 = scmp.ne.s32.totalorder %s156, %s170
      %p172 = scmp.eq.s32.totalorder %s29, 0
      %p173 = por %p171, %p172
      %s175 = sadd.s32 %s174, 1
      %p178 = scmp.eq.s32.totalorder %s23, 3
      %p179 = scmp.ne.s32.totalorder %s174, %s176
      %p180 = scmp.eq.s32.totalorder %s23, 0
      %p181 = por %p179, %p180
      %p182 = scmp.ne.s32.totalorder %s174, %s176
      %p183 = scmp.eq.s32.totalorder %s28, 3
      %p184 = por %p182, %p183
      %p185 = scmp.ne.s32.totalorder %s176, %s177
      %p186 = scmp.eq.s32.totalorder %s28, 0
      %p187 = por %p185, %p186
      %p188 = scmp.ne.s32.totalorder %s176, %s177
      %p189 = scmp.eq.s32.totalorder %s29, 3
      %p190 = por %p188, %p189
      %p192 = scmp.ne.s32.totalorder %s177, %s191
      %p193 = scmp.eq.s32.totalorder %s29, 0
      %p194 = por %p192, %p193
      %s196 = sadd.s32 %s195, 1
      %p199 = scmp.eq.s32.totalorder %s23, 3
      %p200 = scmp.ne.s32.totalorder %s195, %s197
      %p201 = scmp.eq.s32.totalorder %s23, 0
      %p202 = por %p200, %p201
      %p203 = scmp.ne.s32.totalorder %s195, %s197
      %p204 = scmp.eq.s32.totalorder %s28, 3
      %p205 = por %p203, %p204
      %p206 = scmp.ne.s32.totalorder %s197, %s198
      %p207 = scmp.eq.s32.totalorder %s28, 0
      %p208 = por %p206, %p207
      %p209 = scmp.ne.s32.totalorder %s197, %s198
      %p210 = scmp.eq.s32.totalorder %s29, 3
      %p211 = por %p209, %p210
      %p213 = scmp.ne.s32.totalorder %s198, %s212
      %p214 = scmp.eq.s32.totalorder %s29, 0
      %p215 = por %p213, %p214
      %s217 = sadd.s32 %s216, 1
      %p220 = scmp.eq.s32.totalorder %s23, 3
      %p221 = scmp.ne.s32.totalorder %s216, %s218
      %p222 = scmp.eq.s32.totalorder %s23, 0
      %p223 = por %p221, %p222
      %p224 = scmp.ne.s32.totalorder %s216, %s218
      %p225 = scmp.eq.s32.totalorder %s28, 3
      %p226 = por %p224, %p225
      %p227 = scmp.ne.s32.totalorder %s218, %s219
      %p228 = scmp.eq.s32.totalorder %s28, 0
      %p229 = por %p227, %p228
      %p230 = scmp.ne.s32.totalorder %s218, %s219
      %p231 = scmp.eq.s32.totalorder %s29, 3
      %p232 = por %p230, %p231
      %p234 = scmp.ne.s32.totalorder %s219, %s233
      %p235 = scmp.eq.s32.totalorder %s29, 0
      %p236 = por %p234, %p235
      %s238 = sadd.s32 %s237, 1
      %p241 = scmp.eq.s32.totalorder %s23, 3
      %p242 = scmp.ne.s32.totalorder %s237, %s239
      %p243 = scmp.eq.s32.totalorder %s23, 0
      %p244 = por %p242, %p243
      %p245 = scmp.ne.s32.totalorder %s237, %s239
      %p246 = scmp.eq.s32.totalorder %s28, 3
      %p247 = por %p245, %p246
      %p248 = scmp.ne.s32.totalorder %s239, %s240
      %p249 = scmp.eq.s32.totalorder %s28, 0
      %p250 = por %p248, %p249
      %p251 = scmp.ne.s32.totalorder %s239, %s240
      %p252 = scmp.eq.s32.totalorder %s29, 3
      %p253 = por %p251, %p252
      %p255 = scmp.ne.s32.totalorder %s240, %s254
      %p256 = scmp.eq.s32.totalorder %s29, 0
      %p257 = por %p255, %p256
      %p258 = scmp.le.s32.totalorder 1, %s23
      %p259 = scmp.lt.s32.totalorder %s23, 5
      %p260 = pnand %p258, %p259
      %p261 = pneg %p260
      // Predicated region
      $region9: #{tpu_custom_call.1} parent=5 // pred_check
        _
      $region10: #{tpu_custom_call.1} parent=5 // pred_check_branch
        %263 = sbr.rel (%p260) target = $region12
      $region11: #{tpu_custom_call.1} parent=5 // pred_region
        %s264 = ssub.s32 %s23, 1
        // Predicated region
        $region13: #{tpu_custom_call.1} parent=11 // pred_check
          %p265 = pneg %p82
        $region14: #{tpu_custom_call.1} parent=11 // pred_check_branch
          %267 = sbr.rel (%p265) target = $region16
        $region15: #{tpu_custom_call.1} parent=11 // pred_region
          %s269 = ssub.s32 512, 512
          %270 = vsyncadd [#allocation8], %s269
          %s271 = sshll.u32 [#allocation7], 4
          %s272 = int_to_ptr.vmem [resolvable:$true] %s271
          %277 = dma.hbm_to_vmem [thread:$0]  %s1, 512, %s272, [#allocation8], 128, 128, 8
        $region16: #{tpu_custom_call.1} parent=11 // pred_fallthru
          _
        // Predicated region
        $region17: #{tpu_custom_call.1} parent=11 // pred_check
          %p278 = pneg %p103
        $region18: #{tpu_custom_call.1} parent=11 // pred_check_branch
          %280 = sbr.rel (%p278) target = $region20
        $region19: #{tpu_custom_call.1} parent=11 // pred_region
          %s282 = ssub.s32 512, 512
          %283 = vsyncadd [#allocation8], %s282
          %s284 = sshll.u32 [#allocation9], 4
          %s285 = int_to_ptr.vmem [resolvable:$true] %s284
          %290 = dma.hbm_to_vmem [thread:$0]  %s2, 512, %s285, [#allocation8], 128, 128, 8
        $region20: #{tpu_custom_call.1} parent=11 // pred_fallthru
          _
        // Predicated region
        $region21: #{tpu_custom_call.1} parent=11 // pred_check
          %p291 = pneg %p124
        $region22: #{tpu_custom_call.1} parent=11 // pred_check_branch
          %293 = sbr.rel (%p291) target = $region24
        $region23: #{tpu_custom_call.1} parent=11 // pred_region
          %s295 = ssub.s32 64, 64
          %296 = vsyncadd [#allocation11], %s295
          %s298 = sshll.u32 [#allocation10], 4
          %s299 = int_to_ptr.vmem [resolvable:$true] %s298
          %301 = dma.hbm_to_vmem [thread:$0]  %s3, 64, %s299, [#allocation11]
        $region24: #{tpu_custom_call.1} parent=11 // pred_fallthru
          _
        // Predicated region
        $region25: #{tpu_custom_call.1} parent=11 // pred_check
          %p302 = pneg %p145
        $region26: #{tpu_custom_call.1} parent=11 // pred_check_branch
          %304 = sbr.rel (%p302) target = $region28
        $region27: #{tpu_custom_call.1} parent=11 // pred_region
          %s306 = ssub.s32 64, 64
          %307 = vsyncadd [#allocation11], %s306
          %s309 = sshll.u32 [#allocation12], 4
          %s310 = int_to_ptr.vmem [resolvable:$true] %s309
          %312 = dma.hbm_to_vmem [thread:$0]  %s4, 64, %s310, [#allocation11]
        $region28: #{tpu_custom_call.1} parent=11 // pred_fallthru
          _
        // Predicated region
        $region29: #{tpu_custom_call.1} parent=11 // pred_check
          %p313 = pneg %p166
        $region30: #{tpu_custom_call.1} parent=11 // pred_check_branch
          %315 = sbr.rel (%p313) target = $region32
        $region31: #{tpu_custom_call.1} parent=11 // pred_region
          %s317 = ssub.s32 16, 16
          %318 = vsyncadd [#allocation14], %s317
          %s320 = sshll.u32 [#allocation13], 4
          %s321 = int_to_ptr.vmem [resolvable:$true] %s320
          %323 = dma.hbm_to_vmem [thread:$0]  %s5, 16, %s321, [#allocation14]
        $region32: #{tpu_custom_call.1} parent=11 // pred_fallthru
          _
        // Predicated region
        $region33: #{tpu_custom_call.1} parent=11 // pred_check
          %p324 = pneg %p187
        $region34: #{tpu_custom_call.1} parent=11 // pred_check_branch
          %326 = sbr.rel (%p324) target = $region36
        $region35: #{tpu_custom_call.1} parent=11 // pred_region
          %s328 = ssub.s32 2048, 2048
          %329 = vsyncadd [#allocation14], %s328
          %s330 = sshll.u32 [#allocation15], 4
          %s331 = int_to_ptr.vmem [resolvable:$true] %s330
          %336 = dma.hbm_to_vmem [thread:$0]  %s6, 2048, %s331, [#allocation14], 128, 128, 8
        $region36: #{tpu_custom_call.1} parent=11 // pred_fallthru
          _
        // Predicated region
        $region37: #{tpu_custom_call.1} parent=11 // pred_check
          %p337 = pneg %p208
        $region38: #{tpu_custom_call.1} parent=11 // pred_check_branch
          %339 = sbr.rel (%p337) target = $region40
        $region39: #{tpu_custom_call.1} parent=11 // pred_region
          %s341 = ssub.s32 2048, 2048
          %342 = vsyncadd [#allocation17], %s341
          %s343 = sshll.u32 [#allocation16], 4
          %s344 = int_to_ptr.vmem [resolvable:$true] %s343
          %349 = dma.hbm_to_vmem [thread:$0]  %s7, 2048, %s344, [#allocation17], 128, 128, 8
        $region40: #{tpu_custom_call.1} parent=11 // pred_fallthru
          _
        // Predicated region
        $region41: #{tpu_custom_call.1} parent=11 // pred_check
          %p350 = pneg %p229
        $region42: #{tpu_custom_call.1} parent=11 // pred_check_branch
          %352 = sbr.rel (%p350) target = $region44
        $region43: #{tpu_custom_call.1} parent=11 // pred_region
          %s354 = ssub.s32 16, 16
          %355 = vsyncadd [#allocation17], %s354
          %s357 = sshll.u32 [#allocation18], 4
          %s358 = int_to_ptr.vmem [resolvable:$true] %s357
          %360 = dma.hbm_to_vmem [thread:$0]  %s8, 16, %s358, [#allocation17]
        $region44: #{tpu_custom_call.1} parent=11 // pred_fallthru
          _
      $region12: #{tpu_custom_call.1} parent=5 // pred_fallthru
        _
      %p361 = scmp.lt.s32.totalorder %s23, 4
      // Predicated region
      $region45: #{tpu_custom_call.1} parent=5 // pred_check
        %p362 = pneg %p361
      $region46: #{tpu_custom_call.1} parent=5 // pred_check_branch
        %364 = sbr.rel (%p362) target = $region48
      $region47: #{tpu_custom_call.1} parent=5 // pred_region
        // Predicated region
        $region49: #{tpu_custom_call.1} parent=47 // pred_check
          %p365 = pneg %p55
        $region50: #{tpu_custom_call.1} parent=47 // pred_check_branch
          %367 = sbr.rel (%p365) target = $region52
        $region51: #{tpu_custom_call.1} parent=47 // pred_region
          %s368 = sand.u32 %s45, 1
          %s369 = scalar_lea.sflag [#allocation5], %s368
          %s370 = sand.u32 %s45, 1
          %s371 = smul.addr %s370, 8
          %s372 = scalar_lea.vmem [#allocation4], %s371
          %s373 = smul.u32 2, %s31
          %s375 = ssub.s32 128, 128
          %376 = vsyncadd %s369, %s375
          %s377 = smul.addr %s373, 64
          %s378 = scalar_lea.hbm %s0, %s377
          %s379 = sshll.u32 %s372, 4
          %s380 = int_to_ptr.vmem [resolvable:$true] %s379
          %385 = dma.hbm_to_vmem [thread:$0]  %s378, 128, %s380, %s369, 64, 64, 4
        $region52: #{tpu_custom_call.1} parent=47 // pred_fallthru
          _
      $region48: #{tpu_custom_call.1} parent=5 // pred_fallthru
        _
      %p386 = scmp.le.s32.totalorder 1, %s23
      %p387 = scmp.lt.s32.totalorder %s23, 5
      %p388 = pnand %p386, %p387
      %p389 = pneg %p388
      // Predicated region
      $region53: #{tpu_custom_call.1} parent=5 // pred_check
        _
      $region54: #{tpu_custom_call.1} parent=5 // pred_check_branch
        %391 = sbr.rel (%p388) target = $region56
      $region55: #{tpu_custom_call.1} parent=5 // pred_region
        %s392 = ssub.s32 %s23, 1
        %s393 = sand.u32 %s48, 1
        %s394 = scalar_lea.sflag [#allocation5], %s393
        %s395 = sand.u32 %s48, 1
        %s396 = smul.addr %s395, 8
        %s397 = scalar_lea.vmem [#allocation4], %s396
        // Predicated region
        $region57: #{tpu_custom_call.1} parent=55 // pred_check
          %p398 = pneg %p61
        $region58: #{tpu_custom_call.1} parent=55 // pred_check_branch
          %400 = sbr.rel (%p398) target = $region60
        $region59: #{tpu_custom_call.1} parent=55 // pred_region
          %401 = dma.done %s394, 128
        $region60: #{tpu_custom_call.1} parent=55 // pred_fallthru
          _
        // Predicated region
        $region61: #{tpu_custom_call.1} parent=55 // pred_check
          %p402 = pneg %p82
        $region62: #{tpu_custom_call.1} parent=55 // pred_check_branch
          %404 = sbr.rel (%p402) target = $region64
        $region63: #{tpu_custom_call.1} parent=55 // pred_region
          %405 = dma.done [#allocation8], 512
        $region64: #{tpu_custom_call.1} parent=55 // pred_fallthru
          _
        // Predicated region
        $region65: #{tpu_custom_call.1} parent=55 // pred_check
          %p406 = pneg %p103
        $region66: #{tpu_custom_call.1} parent=55 // pred_check_branch
          %408 = sbr.rel (%p406) target = $region68
        $region67: #{tpu_custom_call.1} parent=55 // pred_region
          %409 = dma.done [#allocation8], 512
        $region68: #{tpu_custom_call.1} parent=55 // pred_fallthru
          _
        // Predicated region
        $region69: #{tpu_custom_call.1} parent=55 // pred_check
          %p410 = pneg %p124
        $region70: #{tpu_custom_call.1} parent=55 // pred_check_branch
          %412 = sbr.rel (%p410) target = $region72
        $region71: #{tpu_custom_call.1} parent=55 // pred_region
          %413 = dma.done [#allocation11], 64
        $region72: #{tpu_custom_call.1} parent=55 // pred_fallthru
          _
        // Predicated region
        $region73: #{tpu_custom_call.1} parent=55 // pred_check
          %p414 = pneg %p145
        $region74: #{tpu_custom_call.1} parent=55 // pred_check_branch
          %416 = sbr.rel (%p414) target = $region76
        $region75: #{tpu_custom_call.1} parent=55 // pred_region
          %417 = dma.done [#allocation11], 64
        $region76: #{tpu_custom_call.1} parent=55 // pred_fallthru
          _
        // Predicated region
        $region77: #{tpu_custom_call.1} parent=55 // pred_check
          %p418 = pneg %p166
        $region78: #{tpu_custom_call.1} parent=55 // pred_check_branch
          %420 = sbr.rel (%p418) target = $region80
        $region79: #{tpu_custom_call.1} parent=55 // pred_region
          %421 = dma.done [#allocation14], 16
        $region80: #{tpu_custom_call.1} parent=55 // pred_fallthru
          _
        // Predicated region
        $region81: #{tpu_custom_call.1} parent=55 // pred_check
          %p422 = pneg %p187
        $region82: #{tpu_custom_call.1} parent=55 // pred_check_branch
          %424 = sbr.rel (%p422) target = $region84
        $region83: #{tpu_custom_call.1} parent=55 // pred_region
          %425 = dma.done [#allocation14], 2048
        $region84: #{tpu_custom_call.1} parent=55 // pred_fallthru
          _
        // Predicated region
        $region85: #{tpu_custom_call.1} parent=55 // pred_check
          %p426 = pneg %p208
        $region86: #{tpu_custom_call.1} parent=55 // pred_check_branch
          %428 = sbr.rel (%p426) target = $region88
        $region87: #{tpu_custom_call.1} parent=55 // pred_region
          %429 = dma.done [#allocation17], 2048
        $region88: #{tpu_custom_call.1} parent=55 // pred_fallthru
          _
        // Predicated region
        $region89: #{tpu_custom_call.1} parent=55 // pred_check
          %p430 = pneg %p229
        $region90: #{tpu_custom_call.1} parent=55 // pred_check_branch
          %432 = sbr.rel (%p430) target = $region92
        $region91: #{tpu_custom_call.1} parent=55 // pred_region
          %433 = dma.done [#allocation17], 16
        $region92: #{tpu_custom_call.1} parent=55 // pred_fallthru
          _
        %s434 = sand.u32 %s48, 1
        %s435 = scalar_lea.sflag [#allocation5], %s434
        %s436 = sand.u32 %s48, 1
        %s437 = smul.addr %s436, 8
        %s438 = scalar_lea.vmem [#allocation4], %s437
        %p439 = pneg %p61
        %p440 = pneg %p58
        %p441 = pneg %p82
        %p442 = pneg %p79
        %p443 = pneg %p103
        %p444 = pneg %p100
        %p445 = pneg %p124
        %p446 = pneg %p121
        %p447 = pneg %p145
        %p448 = pneg %p142
        %p449 = pneg %p166
        %p450 = pneg %p163
        %p451 = pneg %p187
        %p452 = pneg %p184
        %p453 = pneg %p208
        %p454 = pneg %p205
        %p455 = pneg %p229
        %p456 = pneg %p226
        %p457 = pneg %p250
        %p458 = pneg %p247
        %s459 = smul.u32 2, %s33
        %s461 = smul.u32 %s33, 16
        %s462 = scalar_lea.vmem [#allocation9], %s461
        %v463 = vld [vmem:[%s462] sm:$0xff]
        %v464 = vld [vmem:[%s462 + $0x8] sm:$0xff]
        %p465 = scmp.eq.s32.totalorder %s32, 0
        // Predicated region
        $region93: #{tpu_custom_call.1} parent=55 // pred_check
          %p466 = pneg %p465
        $region94: #{tpu_custom_call.1} parent=55 // pred_check_branch
          %468 = sbr.rel (%p466) target = $region96
        $region95: #{tpu_custom_call.1} parent=55 // pred_region
          %v469 = vld [vmem:[#allocation7] sm:$0xff]
          %v470 = vld [vmem:[#allocation7 + $0x8] sm:$0xff]
          %v471 = vld [vmem:[#allocation7 + $0x10] sm:$0xff]
          %v472 = vld [vmem:[#allocation7 + $0x18] sm:$0xff]
          %v473 = vpack.c.bf16 %v470, %v469
          %v474 = vpack.c.bf16 %v472, %v471
          %v475 = vld [vmem:[%s397] sm:$0xf]
          %v476 = vld [vmem:[%s397 + $0x4] sm:$0xf]
          %v479 = vunpack.c.l.b16 %v475
          %v480 = vunpack.c.l.b16 %v476
          %v481 = vpack.c.b16 %v480, %v479
          %vm482 = vcmask 261120
          %v484 = vsel %vm482, %v481, 0
          %486 = vmatprep.subr.bf16.mxu0 0
          %487 = vmatpush1.bf16.msra.mxu0 %v473
          %488 = vmatprep.subr.bf16.mxu0 0
          %489 = vmatpush1.bf16.msra.mxu0 %v474
          %490 = vmatprep.subr.bf16.mxu0 0
          %491 = vmatpush1.bf16.msra.mxu0 0
          %492 = vmatprep.subr.bf16.mxu0 0
          %493 = vmatpush1.bf16.msra.mxu0 0
          %494 = vmatprep.subr.bf16.mxu0 0
          %495 = vmatpush1.bf16.msra.mxu0 0
          %496 = vmatprep.subr.bf16.mxu0 0
          %497 = vmatpush1.bf16.msra.mxu0 0
          %498 = vmatprep.subr.bf16.mxu0 0
          %499 = vmatpush1.bf16.msra.mxu0 0
          %500 = vmatprep.subr.bf16.mxu0 0
          %501 = vmatpush1.bf16.msra.mxu0 0
          %502 = vmatprep.subr.bf16.mxu0 0
          %503 = vmatpush1.bf16.msra.mxu0 0
          %504 = vmatprep.subr.bf16.mxu0 0
          %505 = vmatpush1.bf16.msra.mxu0 0
          %506 = vmatprep.subr.bf16.mxu0 0
          %507 = vmatpush1.bf16.msra.mxu0 0
          %508 = vmatprep.subr.bf16.mxu0 0
          %509 = vmatpush1.bf16.msra.mxu0 0
          %510 = vmatprep.subr.bf16.mxu0 0
          %511 = vmatpush1.bf16.msra.mxu0 0
          %512 = vmatprep.subr.bf16.mxu0 0
          %513 = vmatpush1.bf16.msra.mxu0 0
          %514 = vmatprep.subr.bf16.mxu0 0
          %515 = vmatpush1.bf16.msra.mxu0 0
          %516 = vmatprep.subr.bf16.mxu0 0
          %517 = vmatpush1.bf16.msra.mxu0 0
          %518 = vmatprep.mubr.bf16.mxu0 0
          %519 = vmatmul.mubr.bf16.gmra.mrb[0].mxu0 %v484
          %v520 = vpop.f32.mrb[0].mxu0
          %v521 = vadd.f32 0.0, %v520
          %v522 = vpop.f32.mrb[0].mxu0
          %v523 = vpop.f32.mrb[0].mxu0
          %v524 = vadd.f32 0.0, %v523
          %v525 = vpop.f32.mrb[0].mxu0
          %526 = vdwg.mxu0
          %528 = vset.pattern.permute.xlu0 0
          %529 = vperm.xlu0 %528, %v463
          %v530 = vpop.permute.xlu0 %529
          %533 = vset.pattern.permute.xlu0 0
          %534 = vperm.xlu0 %533, %v464
          %v535 = vpop.permute.xlu0 %534
          %v537 = vmul.f32 %v521, %v530
          %v538 = vmul.f32 %v524, %v535
          %s539 = scalar_lea.vmem [#allocation7], %s461
          %v540 = vld [vmem:[%s539] sm:$0xff]
          %v541 = vld [vmem:[%s539 + $0x8] sm:$0xff]
          %v542 = vld [vmem:[#allocation10] sm:$0xf]
          %v543 = vld [vmem:[#allocation12] sm:$0xf]
          %vm544 = vcmask 31744
          %v546 = vsel %vm544, %v540, 0
          %v549 = vsel %vm544, %v541, 0
          %vm551 = vcmask 1043456
          %v553 = vsel %vm551, %v543, 0
          %555 = vmatprep.subr.mxu0 0.0
          %556 = vmatpush1.msra.mxu0 %v553
          %557 = vmatprep.subr.mxu0 0.0
          %558 = vmatpush1.msra.mxu0 0.0
          %559 = vmatprep.subr.mxu0 0.0
          %560 = vmatpush1.msra.mxu0 0.0
          %561 = vmatprep.subr.mxu0 0.0
          %562 = vmatpush1.msra.mxu0 0.0
          %563 = vmatprep.subr.mxu0 0.0
          %564 = vmatpush1.msra.mxu0 0.0
          %565 = vmatprep.subr.mxu0 0.0
          %566 = vmatpush1.msra.mxu0 0.0
          %567 = vmatprep.subr.mxu0 0.0
          %568 = vmatpush1.msra.mxu0 0.0
          %569 = vmatprep.subr.mxu0 0.0
          %570 = vmatpush1.msra.mxu0 0.0
          %571 = vmatprep.subr.mxu0 0.0
          %572 = vmatpush1.msra.mxu0 0.0
          %573 = vmatprep.subr.mxu0 0.0
          %574 = vmatpush1.msra.mxu0 0.0
          %575 = vmatprep.subr.mxu0 0.0
          %576 = vmatpush1.msra.mxu0 0.0
          %577 = vmatprep.subr.mxu0 0.0
          %578 = vmatpush1.msra.mxu0 0.0
          %579 = vmatprep.subr.mxu0 0.0
          %580 = vmatpush1.msra.mxu0 0.0
          %581 = vmatprep.subr.mxu0 0.0
          %582 = vmatpush1.msra.mxu0 0.0
          %583 = vmatprep.subr.mxu0 0.0
          %584 = vmatpush1.msra.mxu0 0.0
          %585 = vmatprep.subr.mxu0 0.0
          %586 = vmatpush1.msra.mxu0 0.0
          %587 = vmatprep.subr.mxu0 0.0
          %588 = vmatpush1.msra.mxu0 0.0
          %589 = vmatprep.subr.mxu0 0.0
          %590 = vmatpush1.msra.mxu0 0.0
          %591 = vmatprep.subr.mxu0 0.0
          %592 = vmatpush1.msra.mxu0 0.0
          %593 = vmatprep.subr.mxu0 0.0
          %594 = vmatpush1.msra.mxu0 0.0
          %595 = vmatprep.subr.mxu0 0.0
          %596 = vmatpush1.msra.mxu0 0.0
          %597 = vmatprep.subr.mxu0 0.0
          %598 = vmatpush1.msra.mxu0 0.0
          %599 = vmatprep.subr.mxu0 0.0
          %600 = vmatpush1.msra.mxu0 0.0
          %601 = vmatprep.subr.mxu0 0.0
          %602 = vmatpush1.msra.mxu0 0.0
          %603 = vmatprep.subr.mxu0 0.0
          %604 = vmatpush1.msra.mxu0 0.0
          %605 = vmatprep.subr.mxu0 0.0
          %606 = vmatpush1.msra.mxu0 0.0
          %607 = vmatprep.subr.mxu0 0.0
          %608 = vmatpush1.msra.mxu0 0.0
          %609 = vmatprep.subr.mxu0 0.0
          %610 = vmatpush1.msra.mxu0 0.0
          %611 = vmatprep.subr.mxu0 0.0
          %612 = vmatpush1.msra.mxu0 0.0
          %613 = vmatprep.subr.mxu0 0.0
          %614 = vmatpush1.msra.mxu0 0.0
          %615 = vmatprep.subr.mxu0 0.0
          %616 = vmatpush1.msra.mxu0 0.0
          %617 = vmatprep.subr.mxu0 0.0
          %618 = vmatpush1.msra.mxu0 0.0
          %619 = vmatprep.mubr.f32.mxu0 0.0
          %620 = vmatmul.mubr.f32.gmra.mrb[0].mxu0 %v546
          %v621 = vpop.f32.mrb[0].mxu0
          %v622 = vadd.f32 0.0, %v621
          %v623 = vpop.f32.mrb[0].mxu0
          %624 = vmatprep.mubr.f32.mxu0 0.0
          %625 = vmatmul.mubr.f32.gmra.mrb[0].mxu0 %v549
          %v626 = vpop.f32.mrb[0].mxu0
          %v627 = vadd.f32 0.0, %v626
          %v628 = vpop.f32.mrb[0].mxu0
          %629 = vdwg.mxu0
          %v631 = vsel %vm544, %v537, 0
          %v634 = vsel %vm544, %v538, 0
          %v637 = vsel %vm551, %v542, 0
          %639 = vmatprep.subr.mxu0 0.0
          %640 = vmatpush1.msra.mxu0 %v637
          %641 = vmatprep.subr.mxu0 0.0
          %642 = vmatpush1.msra.mxu0 0.0
          %643 = vmatprep.subr.mxu0 0.0
          %644 = vmatpush1.msra.mxu0 0.0
          %645 = vmatprep.subr.mxu0 0.0
          %646 = vmatpush1.msra.mxu0 0.0
          %647 = vmatprep.subr.mxu0 0.0
          %648 = vmatpush1.msra.mxu0 0.0
          %649 = vmatprep.subr.mxu0 0.0
          %650 = vmatpush1.msra.mxu0 0.0
          %651 = vmatprep.subr.mxu0 0.0
          %652 = vmatpush1.msra.mxu0 0.0
          %653 = vmatprep.subr.mxu0 0.0
          %654 = vmatpush1.msra.mxu0 0.0
          %655 = vmatprep.subr.mxu0 0.0
          %656 = vmatpush1.msra.mxu0 0.0
          %657 = vmatprep.subr.mxu0 0.0
          %658 = vmatpush1.msra.mxu0 0.0
          %659 = vmatprep.subr.mxu0 0.0
          %660 = vmatpush1.msra.mxu0 0.0
          %661 = vmatprep.subr.mxu0 0.0
          %662 = vmatpush1.msra.mxu0 0.0
          %663 = vmatprep.subr.mxu0 0.0
          %664 = vmatpush1.msra.mxu0 0.0
          %665 = vmatprep.subr.mxu0 0.0
          %666 = vmatpush1.msra.mxu0 0.0
          %667 = vmatprep.subr.mxu0 0.0
          %668 = vmatpush1.msra.mxu0 0.0
          %669 = vmatprep.subr.mxu0 0.0
          %670 = vmatpush1.msra.mxu0 0.0
          %671 = vmatprep.subr.mxu0 0.0
          %672 = vmatpush1.msra.mxu0 0.0
          %673 = vmatprep.subr.mxu0 0.0
          %674 = vmatpush1.msra.mxu0 0.0
          %675 = vmatprep.subr.mxu0 0.0
          %676 = vmatpush1.msra.mxu0 0.0
          %677 = vmatprep.subr.mxu0 0.0
          %678 = vmatpush1.msra.mxu0 0.0
          %679 = vmatprep.subr.mxu0 0.0
          %680 = vmatpush1.msra.mxu0 0.0
          %681 = vmatprep.subr.mxu0 0.0
          %682 = vmatpush1.msra.mxu0 0.0
          %683 = vmatprep.subr.mxu0 0.0
          %684 = vmatpush1.msra.mxu0 0.0
          %685 = vmatprep.subr.mxu0 0.0
          %686 = vmatpush1.msra.mxu0 0.0
          %687 = vmatprep.subr.mxu0 0.0
          %688 = vmatpush1.msra.mxu0 0.0
          %689 = vmatprep.subr.mxu0 0.0
          %690 = vmatpush1.msra.mxu0 0.0
          %691 = vmatprep.subr.mxu0 0.0
          %692 = vmatpush1.msra.mxu0 0.0
          %693 = vmatprep.subr.mxu0 0.0
          %694 = vmatpush1.msra.mxu0 0.0
          %695 = vmatprep.subr.mxu0 0.0
          %696 = vmatpush1.msra.mxu0 0.0
          %697 = vmatprep.subr.mxu0 0.0
          %698 = vmatpush1.msra.mxu0 0.0
          %699 = vmatprep.subr.mxu0 0.0
          %700 = vmatpush1.msra.mxu0 0.0
          %701 = vmatprep.subr.mxu0 0.0
          %702 = vmatpush1.msra.mxu0 0.0
          %703 = vmatprep.mubr.f32.mxu0 0.0
          %704 = vmatmul.mubr.f32.gmra.mrb[0].mxu0 %v631
          %v705 = vpop.f32.mrb[0].mxu0
          %v706 = vadd.f32 %v622, %v705
          %v707 = vpop.f32.mrb[0].mxu0
          %708 = vmatprep.mubr.f32.mxu0 0.0
          %709 = vmatmul.mubr.f32.gmra.mrb[0].mxu0 %v634
          %v710 = vpop.f32.mrb[0].mxu0
          %v711 = vadd.f32 %v627, %v710
          %v712 = vpop.f32.mrb[0].mxu0
          %713 = vdwg.mxu0
          %v714 = vld [vmem:[#allocation13] sm:$0x1]
          %v716 = vlaneseq
          %v717 = vshrl.u32 %v716, 7
          %v718 = vsub.s32 0, %v717
          %v719 = vrot.slane %v714, %v718
          %v721 = vadd.f32 %v706, %v719
          %v722 = vadd.f32 %v711, %v719
          %v723 = vmax.f32 %v721, 0.0
          %v724 = vmax.f32 %v722, 0.0
          %s725 = scalar_lea.vmem [#allocation2], %s461
          %726 = vst [vmem:[%s725] sm:$0xff] %v723
          %727 = vst [vmem:[%s725 + $0x8] sm:$0xff] %v724
          %v728 = vld [vmem:[#allocation15] sm:$0xff]
          %v729 = vld [vmem:[#allocation15 + $0x8] sm:$0xff]
          %v730 = vld [vmem:[#allocation15 + $0x10] sm:$0xff]
          %v731 = vld [vmem:[#allocation15 + $0x18] sm:$0xff]
          %v732 = vld [vmem:[#allocation15 + $0x20] sm:$0xff]
          %v733 = vld [vmem:[#allocation15 + $0x28] sm:$0xff]
          %v734 = vld [vmem:[#allocation15 + $0x30] sm:$0xff]
          %v735 = vld [vmem:[#allocation15 + $0x38] sm:$0xff]
          %v736 = vld [vmem:[#allocation15 + $0x40] sm:$0xff]
          %v737 = vld [vmem:[#allocation15 + $0x48] sm:$0xff]
          %v738 = vld [vmem:[#allocation15 + $0x50] sm:$0xff]
          %v739 = vld [vmem:[#allocation15 + $0x58] sm:$0xff]
          %v740 = vld [vmem:[#allocation15 + $0x60] sm:$0xff]
          %v741 = vld [vmem:[#allocation15 + $0x68] sm:$0xff]
          %v742 = vld [vmem:[#allocation15 + $0x70] sm:$0xff]
          %v743 = vld [vmem:[#allocation15 + $0x78] sm:$0xff]
          %744 = vmatprep.subr.mxu0 0.0
          %745 = vmatpush1.msra.mxu0 %v728
          %746 = vmatprep.subr.mxu0 0.0
          %747 = vmatpush1.msra.mxu0 %v729
          %748 = vmatprep.subr.mxu0 0.0
          %749 = vmatpush1.msra.mxu0 %v730
          %750 = vmatprep.subr.mxu0 0.0
          %751 = vmatpush1.msra.mxu0 %v731
          %752 = vmatprep.subr.mxu0 0.0
          %753 = vmatpush1.msra.mxu0 %v732
          %754 = vmatprep.subr.mxu0 0.0
          %755 = vmatpush1.msra.mxu0 %v733
          %756 = vmatprep.subr.mxu0 0.0
          %757 = vmatpush1.msra.mxu0 %v734
          %758 = vmatprep.subr.mxu0 0.0
          %759 = vmatpush1.msra.mxu0 %v735
          %760 = vmatprep.subr.mxu0 0.0
          %761 = vmatpush1.msra.mxu0 %v736
          %762 = vmatprep.subr.mxu0 0.0
          %763 = vmatpush1.msra.mxu0 %v737
          %764 = vmatprep.subr.mxu0 0.0
          %765 = vmatpush1.msra.mxu0 %v738
          %766 = vmatprep.subr.mxu0 0.0
          %767 = vmatpush1.msra.mxu0 %v739
          %768 = vmatprep.subr.mxu0 0.0
          %769 = vmatpush1.msra.mxu0 %v740
          %770 = vmatprep.subr.mxu0 0.0
          %771 = vmatpush1.msra.mxu0 %v741
          %772 = vmatprep.subr.mxu0 0.0
          %773 = vmatpush1.msra.mxu0 %v742
          %774 = vmatprep.subr.mxu0 0.0
          %775 = vmatpush1.msra.mxu0 %v743
          %776 = vmatprep.subr.mxu0 0.0
          %777 = vmatpush1.msra.mxu0 0.0
          %778 = vmatprep.subr.mxu0 0.0
          %779 = vmatpush1.msra.mxu0 0.0
          %780 = vmatprep.subr.mxu0 0.0
          %781 = vmatpush1.msra.mxu0 0.0
          %782 = vmatprep.subr.mxu0 0.0
          %783 = vmatpush1.msra.mxu0 0.0
          %784 = vmatprep.subr.mxu0 0.0
          %785 = vmatpush1.msra.mxu0 0.0
          %786 = vmatprep.subr.mxu0 0.0
          %787 = vmatpush1.msra.mxu0 0.0
          %788 = vmatprep.subr.mxu0 0.0
          %789 = vmatpush1.msra.mxu0 0.0
          %790 = vmatprep.subr.mxu0 0.0
          %791 = vmatpush1.msra.mxu0 0.0
          %792 = vmatprep.subr.mxu0 0.0
          %793 = vmatpush1.msra.mxu0 0.0
          %794 = vmatprep.subr.mxu0 0.0
          %795 = vmatpush1.msra.mxu0 0.0
          %796 = vmatprep.subr.mxu0 0.0
          %797 = vmatpush1.msra.mxu0 0.0
          %798 = vmatprep.subr.mxu0 0.0
          %799 = vmatpush1.msra.mxu0 0.0
          %800 = vmatprep.subr.mxu0 0.0
          %801 = vmatpush1.msra.mxu0 0.0
          %802 = vmatprep.subr.mxu0 0.0
          %803 = vmatpush1.msra.mxu0 0.0
          %804 = vmatprep.subr.mxu0 0.0
          %805 = vmatpush1.msra.mxu0 0.0
          %806 = vmatprep.subr.mxu0 0.0
          %807 = vmatpush1.msra.mxu0 0.0
          %808 = vmatprep.mubr.f32.mxu0 0.0
          %809 = vmatmul.mubr.f32.gmra.mrb[0].mxu0 %v723
          %v810 = vpop.f32.mrb[0].mxu0
          %v811 = vadd.f32 0.0, %v810
          %v812 = vpop.f32.mrb[0].mxu0
          %813 = vmatprep.mubr.f32.mxu0 0.0
          %814 = vmatmul.mubr.f32.gmra.mrb[0].mxu0 %v724
          %v815 = vpop.f32.mrb[0].mxu0
          %v816 = vadd.f32 0.0, %v815
          %v817 = vpop.f32.mrb[0].mxu0
          %818 = vdwg.mxu0
          %v819 = vpack.c.bf16 %v816, %v811
          %s820 = sshra.s32 %s461, 4
          %s821 = sand.u32 %s461, 15
          %s822 = smul.addr %s820, 8
          %s823 = scalar_lea.vmem [#allocation3], %s822
          %824 = vst [vmem:[%s823] sm:$0xff] %v819
        $region96: #{tpu_custom_call.1} parent=55 // pred_fallthru
          _
        %p825 = scmp.eq.s32.totalorder %s32, 1
        // Predicated region
        $region97: #{tpu_custom_call.1} parent=55 // pred_check
          %p826 = pneg %p825
        $region98: #{tpu_custom_call.1} parent=55 // pred_check_branch
          %828 = sbr.rel (%p826) target = $region100
        $region99: #{tpu_custom_call.1} parent=55 // pred_region
          %v829 = vld [vmem:[%s397] sm:$0xf]
          %v830 = vld [vmem:[%s397 + $0x4] sm:$0xf]
          %v831 = vld [vmem:[#allocation3] sm:$0xff]
          %v832 = vld [vmem:[#allocation3 + $0x8] sm:$0xff]
          %v835 = vunpack.c.l.b16 %v829
          %v836 = vunpack.c.l.b16 %v830
          %v837 = vpack.c.b16 %v836, %v835
          %vm838 = vcmask 261120
          %v840 = vsel %vm838, %v837, 0
          %842 = vmatprep.subr.bf16.mxu0 0
          %843 = vmatpush1.bf16.msra.mxu0 %v831
          %844 = vmatprep.subr.bf16.mxu0 0
          %845 = vmatpush1.bf16.msra.mxu0 %v832
          %846 = vmatprep.subr.bf16.mxu0 0
          %847 = vmatpush1.bf16.msra.mxu0 0
          %848 = vmatprep.subr.bf16.mxu0 0
          %849 = vmatpush1.bf16.msra.mxu0 0
          %850 = vmatprep.subr.bf16.mxu0 0
          %851 = vmatpush1.bf16.msra.mxu0 0
          %852 = vmatprep.subr.bf16.mxu0 0
          %853 = vmatpush1.bf16.msra.mxu0 0
          %854 = vmatprep.subr.bf16.mxu0 0
          %855 = vmatpush1.bf16.msra.mxu0 0
          %856 = vmatprep.subr.bf16.mxu0 0
          %857 = vmatpush1.bf16.msra.mxu0 0
          %858 = vmatprep.subr.bf16.mxu0 0
          %859 = vmatpush1.bf16.msra.mxu0 0
          %860 = vmatprep.subr.bf16.mxu0 0
          %861 = vmatpush1.bf16.msra.mxu0 0
          %862 = vmatprep.subr.bf16.mxu0 0
          %863 = vmatpush1.bf16.msra.mxu0 0
          %864 = vmatprep.subr.bf16.mxu0 0
          %865 = vmatpush1.bf16.msra.mxu0 0
          %866 = vmatprep.subr.bf16.mxu0 0
          %867 = vmatpush1.bf16.msra.mxu0 0
          %868 = vmatprep.subr.bf16.mxu0 0
          %869 = vmatpush1.bf16.msra.mxu0 0
          %870 = vmatprep.subr.bf16.mxu0 0
          %871 = vmatpush1.bf16.msra.mxu0 0
          %872 = vmatprep.subr.bf16.mxu0 0
          %873 = vmatpush1.bf16.msra.mxu0 0
          %874 = vmatprep.mubr.bf16.mxu0 0
          %875 = vmatmul.mubr.bf16.gmra.mrb[0].mxu0 %v840
          %v876 = vpop.f32.mrb[0].mxu0
          %v877 = vadd.f32 0.0, %v876
          %v878 = vpop.f32.mrb[0].mxu0
          %v879 = vpop.f32.mrb[0].mxu0
          %v880 = vadd.f32 0.0, %v879
          %v881 = vpop.f32.mrb[0].mxu0
          %882 = vdwg.mxu0
          %884 = vset.pattern.permute.xlu0 0
          %885 = vperm.xlu0 %884, %v463
          %v886 = vpop.permute.xlu0 %885
          %889 = vset.pattern.permute.xlu0 0
          %890 = vperm.xlu0 %889, %v464
          %v891 = vpop.permute.xlu0 %890
          %v893 = vmul.f32 %v877, %v886
          %v894 = vmul.f32 %v880, %v891
          %s895 = scalar_lea.vmem [#allocation2], %s461
          %v896 = vld [vmem:[%s895] sm:$0xff]
          %v897 = vld [vmem:[%s895 + $0x8] sm:$0xff]
          %v898 = vld [vmem:[#allocation16] sm:$0xff]
          %v899 = vld [vmem:[#allocation16 + $0x8] sm:$0xff]
          %v900 = vld [vmem:[#allocation16 + $0x10] sm:$0xff]
          %v901 = vld [vmem:[#allocation16 + $0x18] sm:$0xff]
          %v902 = vld [vmem:[#allocation16 + $0x20] sm:$0xff]
          %v903 = vld [vmem:[#allocation16 + $0x28] sm:$0xff]
          %v904 = vld [vmem:[#allocation16 + $0x30] sm:$0xff]
          %v905 = vld [vmem:[#allocation16 + $0x38] sm:$0xff]
          %v906 = vld [vmem:[#allocation16 + $0x40] sm:$0xff]
          %v907 = vld [vmem:[#allocation16 + $0x48] sm:$0xff]
          %v908 = vld [vmem:[#allocation16 + $0x50] sm:$0xff]
          %v909 = vld [vmem:[#allocation16 + $0x58] sm:$0xff]
          %v910 = vld [vmem:[#allocation16 + $0x60] sm:$0xff]
          %v911 = vld [vmem:[#allocation16 + $0x68] sm:$0xff]
          %v912 = vld [vmem:[#allocation16 + $0x70] sm:$0xff]
          %v913 = vld [vmem:[#allocation16 + $0x78] sm:$0xff]
          %914 = vmatprep.subr.mxu0 0.0
          %915 = vmatpush1.msra.mxu0 %v898
          %916 = vmatprep.subr.mxu0 0.0
          %917 = vmatpush1.msra.mxu0 %v899
          %918 = vmatprep.subr.mxu0 0.0
          %919 = vmatpush1.msra.mxu0 %v900
          %920 = vmatprep.subr.mxu0 0.0
          %921 = vmatpush1.msra.mxu0 %v901
          %922 = vmatprep.subr.mxu0 0.0
          %923 = vmatpush1.msra.mxu0 %v902
          %924 = vmatprep.subr.mxu0 0.0
          %925 = vmatpush1.msra.mxu0 %v903
          %926 = vmatprep.subr.mxu0 0.0
          %927 = vmatpush1.msra.mxu0 %v904
          %928 = vmatprep.subr.mxu0 0.0
          %929 = vmatpush1.msra.mxu0 %v905
          %930 = vmatprep.subr.mxu0 0.0
          %931 = vmatpush1.msra.mxu0 %v906
          %932 = vmatprep.subr.mxu0 0.0
          %933 = vmatpush1.msra.mxu0 %v907
          %934 = vmatprep.subr.mxu0 0.0
          %935 = vmatpush1.msra.mxu0 %v908
          %936 = vmatprep.subr.mxu0 0.0
          %937 = vmatpush1.msra.mxu0 %v909
          %938 = vmatprep.subr.mxu0 0.0
          %939 = vmatpush1.msra.mxu0 %v910
          %940 = vmatprep.subr.mxu0 0.0
          %941 = vmatpush1.msra.mxu0 %v911
          %942 = vmatprep.subr.mxu0 0.0
          %943 = vmatpush1.msra.mxu0 %v912
          %944 = vmatprep.subr.mxu0 0.0
          %945 = vmatpush1.msra.mxu0 %v913
          %946 = vmatprep.subr.mxu0 0.0
          %947 = vmatpush1.msra.mxu0 0.0
          %948 = vmatprep.subr.mxu0 0.0
          %949 = vmatpush1.msra.mxu0 0.0
          %950 = vmatprep.subr.mxu0 0.0
          %951 = vmatpush1.msra.mxu0 0.0
          %952 = vmatprep.subr.mxu0 0.0
          %953 = vmatpush1.msra.mxu0 0.0
          %954 = vmatprep.subr.mxu0 0.0
          %955 = vmatpush1.msra.mxu0 0.0
          %956 = vmatprep.subr.mxu0 0.0
          %957 = vmatpush1.msra.mxu0 0.0
          %958 = vmatprep.subr.mxu0 0.0
          %959 = vmatpush1.msra.mxu0 0.0
          %960 = vmatprep.subr.mxu0 0.0
          %961 = vmatpush1.msra.mxu0 0.0
          %962 = vmatprep.subr.mxu0 0.0
          %963 = vmatpush1.msra.mxu0 0.0
          %964 = vmatprep.subr.mxu0 0.0
          %965 = vmatpush1.msra.mxu0 0.0
          %966 = vmatprep.subr.mxu0 0.0
          %967 = vmatpush1.msra.mxu0 0.0
          %968 = vmatprep.subr.mxu0 0.0
          %969 = vmatpush1.msra.mxu0 0.0
          %970 = vmatprep.subr.mxu0 0.0
          %971 = vmatpush1.msra.mxu0 0.0
          %972 = vmatprep.subr.mxu0 0.0
          %973 = vmatpush1.msra.mxu0 0.0
          %974 = vmatprep.subr.mxu0 0.0
          %975 = vmatpush1.msra.mxu0 0.0
          %976 = vmatprep.subr.mxu0 0.0
          %977 = vmatpush1.msra.mxu0 0.0
          %978 = vmatprep.mubr.f32.mxu0 0.0
          %979 = vmatmul.mubr.f32.gmra.mrb[0].mxu0 %v896
          %v980 = vpop.f32.mrb[0].mxu0
          %v981 = vadd.f32 0.0, %v980
          %v982 = vpop.f32.mrb[0].mxu0
          %983 = vmatprep.mubr.f32.mxu0 0.0
          %984 = vmatmul.mubr.f32.gmra.mrb[0].mxu0 %v897
          %v985 = vpop.f32.mrb[0].mxu0
          %v986 = vadd.f32 0.0, %v985
          %v987 = vpop.f32.mrb[0].mxu0
          %988 = vdwg.mxu0
          %v989 = vadd.f32 %v893, %v981
          %v990 = vadd.f32 %v894, %v986
          %v991 = vld [vmem:[#allocation18] sm:$0x1]
          %v993 = vlaneseq
          %v994 = vshrl.u32 %v993, 7
          %v995 = vsub.s32 0, %v994
          %v996 = vrot.slane %v991, %v995
          %v998 = vadd.f32 %v989, %v996
          %v999 = vadd.f32 %v990, %v996
          %v1000 = vlaneseq
          %v1001 = vand.u32 %v1000, 127
          %vm1002 = vcmp.lt.s32.totalorder %v1001, 8
          %v1003 = vsel %vm1002, %v998, -1e+30
          %v1004 = vsel %vm1002, %v999, -1e+30
          %1005 = vmax.xlane.f32.xlu0 %v1003
          %v1006 = vpop.xlane.xlu0 %1005
          %1007 = vmax.xlane.f32.xlu0 %v1004
          %v1008 = vpop.xlane.xlu0 %1007
          %v1009 = vsub.f32 %v1003, %v1006
          %v1010 = vsub.f32 %v1004, %v1008
          %v1011 = vmul.f32 %v1009, 1.442695
          %v1012 = vpow.pop %v1011
          %v1013 = vmul.f32 %v1010, 1.442695
          %v1014 = vpow.pop %v1013
          %1015 = vadd.xlane.f32.xlu0 %v1012
          %v1016 = vpop.xlane.xlu0 %1015
          %1017 = vadd.xlane.f32.xlu0 %v1014
          %v1018 = vpop.xlane.xlu0 %1017
          %v1019 = vlog2.pop %v1016
          %v1020 = vmul.f32 %v1019, 0.6931472
          %v1021 = vlog2.pop %v1018
          %v1022 = vmul.f32 %v1021, 0.6931472
          %v1023 = vsub.f32 %v1009, %v1020
          %v1024 = vsub.f32 %v1010, %v1022
          %s1025 = scalar_lea.vmem [#allocation19], %s461
          %1026 = vst [vmem:[%s1025] sm:$0xff] %v1023
          %1027 = vst [vmem:[%s1025 + $0x8] sm:$0xff] %v1024
        $region100: #{tpu_custom_call.1} parent=55 // pred_fallthru
          _
        // Predicated region
        $region101: #{tpu_custom_call.1} parent=55 // pred_check
          %p1028 = pneg %p247
        $region102: #{tpu_custom_call.1} parent=55 // pred_check_branch
          %1030 = sbr.rel (%p1028) target = $region104
        $region103: #{tpu_custom_call.1} parent=55 // pred_region
          %s1032 = ssub.s32 512, 512
          %1033 = vsyncadd [#allocation6], %s1032
          %s1034 = sshll.u32 [#allocation19], 4
          %s1035 = int_to_ptr.vmem [resolvable:$true] %s1034
          %1040 = dma.vmem_to_hbm [thread:$0]  %s1035, 512, %s9, [#allocation6], 128, 128, 8
        $region104: #{tpu_custom_call.1} parent=55 // pred_fallthru
          _
        // Predicated region
        $region105: #{tpu_custom_call.1} parent=55 // pred_check
          %p1041 = pneg %p247
        $region106: #{tpu_custom_call.1} parent=55 // pred_check_branch
          %1043 = sbr.rel (%p1041) target = $region108
        $region107: #{tpu_custom_call.1} parent=55 // pred_region
          %1044 = dma.done [#allocation6], 512
        $region108: #{tpu_custom_call.1} parent=55 // pred_fallthru
          _
      $region56: #{tpu_custom_call.1} parent=5 // pred_fallthru
        _
      %p1045 = scmp.le.s32.totalorder 2, %s23
      // Predicated region
      $region109: #{tpu_custom_call.1} parent=5 // pred_check
        %p1046 = pneg %p1045
      $region110: #{tpu_custom_call.1} parent=5 // pred_check_branch
        %1048 = sbr.rel (%p1046) target = $region112
      $region111: #{tpu_custom_call.1} parent=5 // pred_region
        %s1049 = ssub.s32 %s23, 2
      $region112: #{tpu_custom_call.1} parent=5 // pred_fallthru
        _
    $region6: #{tpu_custom_call.1} parent=1 // loop_footer
      %s27 = sadd.s32 1, %s23
    $region7: #{tpu_custom_call.1} parent=1 // loop_footer_branch
      %22 = sbr.rel target = $region3
    $region8: #{tpu_custom_call.1} parent=1 // loop_exit
      _
    %1050 = vsyncpa [#allocation5], 1
    %s1051 = scalar_lea.sflag [#allocation5], 1
    %1052 = vsyncpa %s1051, 1
    %1053 = vsyncpa [#allocation8], 1
    %1054 = vsyncpa [#allocation11], 1
    %1055 = vsyncpa [#allocation14], 1
    %1056 = vsyncpa [#allocation17], 1
    %1057 = vsyncpa [#allocation6], 1
    %s1058 = scalar_lea.sflag [#allocation6], 1
    %1059 = vsyncpa %s1058, 1

</llo_original>
